<compile_context>
chip_gen: v7x
topology: tpu7x:2x2x1
jax: 0.10.0
libtpu: 0.0.40
codegen_flags: <defaults>
</compile_context>

<pallas_src>
import functools

import jax
import jax.numpy as jnp
from jax import lax
from jax.experimental import pallas as pl
from jax.experimental.pallas import tpu as pltpu

LANES = 128
DEFAULT_TILE_ROWS = 2048  # 2048 x 128 f32 = 1 MiB per input block


def _round_up(x, m):
    return ((x + m - 1) // m) * m


def _focal_tversky_kernel(o_ref, t_ref, out_ref, tp_acc, sp_acc, st_acc, *,
                          alpha, beta, gamma, smooth,
                          valid_rows, tile_rows, needs_mask):
    i = pl.program_id(0)
    last = pl.num_programs(0) - 1

    @pl.when(i == 0)
    def _init():
        tp_acc[...] = jnp.zeros_like(tp_acc)
        sp_acc[...] = jnp.zeros_like(sp_acc)
        st_acc[...] = jnp.zeros_like(st_acc)

    # Widen to f32 after load: HBM traffic stays at the input's native width;
    # all arithmetic stays f32 (required on v5e's VPU/EUP, and avoids bf16
    # accumulation error on large reductions).
    p = jax.nn.sigmoid(o_ref[...].astype(jnp.float32))
    t = t_ref[...].astype(jnp.float32)

    def accumulate(p_blk, t_blk):
        # Per-lane partial sums: only a sublane-direction reduce per step.
        tp_acc[...] += jnp.sum(p_blk * t_blk, axis=0, keepdims=True)  # sum(p*t)
        sp_acc[...] += jnp.sum(p_blk, axis=0, keepdims=True)          # sum(p)
        st_acc[...] += jnp.sum(t_blk, axis=0, keepdims=True)          # sum(t)

    if needs_mask:  # static Python bool: mask code only emitted when needed
        # Only the last tile can overhang the (lane-padded) array, so the
        # row-level mask runs exclusively on the final grid step; all other
        # steps execute the pure memory-bound path.
        @pl.when(i < last)
        def _full():
            accumulate(p, t)

        @pl.when(i == last)
        def _tail():
            row_ids = lax.broadcasted_iota(jnp.int32, (tile_rows, LANES), 0)
            valid = (i * tile_rows + row_ids) < valid_rows
            accumulate(jnp.where(valid, p, 0.0), jnp.where(valid, t, 0.0))
    else:
        accumulate(p, t)

    @pl.when(i == last)
    def _finish():
        tp = jnp.sum(tp_acc[...])
        sp = jnp.sum(sp_acc[...])
        st = jnp.sum(st_acc[...])
        fp = sp - tp   # ((1 - t) * p).sum()
        fn = st - tp   # (t * (1 - p)).sum()
        tversky = (tp + smooth) / (tp + alpha * fp + beta * fn + smooth)
        # Clamp guards a tiny negative (1 - tversky) producing NaN under a
        # fractional gamma; with gamma=2 it is a no-op in practice.
        base = jnp.maximum(1.0 - tversky, 0.0)
        if float(gamma) == 2.0:
            focal = base * base          # avoid transcendental pow for default
        else:
            focal = base ** gamma
        out_ref[0, 0] = focal


def focal_tversky_loss(outputs, targets, *, alpha=0.5, beta=0.5,
                       gamma=2.0, smooth=1e-5):
    """Matches FocalTverskyLoss.forward(outputs, targets) -> scalar f32."""
    o = jnp.ravel(outputs)   # native dtype; kernel widens to f32 after load
    t = jnp.ravel(targets)
    n = int(o.shape[0])

    if n % LANES != 0:
        # Rare path (total not a multiple of 128): pad with neutral values
        # (sigmoid(-1e4) == 0 exactly in f32, target 0) so padded elements
        # contribute nothing and no per-element mask is needed in-kernel.
        pad = LANES - n % LANES
        o = jnp.pad(o, (0, pad), constant_values=-1e4)
        t = jnp.pad(t, (0, pad), constant_values=0)

    rows = int(o.shape[0]) // LANES
    o2 = o.reshape(rows, LANES)
    t2 = t.reshape(rows, LANES)

    tile_rows = min(DEFAULT_TILE_ROWS, _round_up(rows, 8))
    grid = pl.cdiv(rows, tile_rows)
    needs_mask = (grid * tile_rows) != rows

    kernel = functools.partial(
        _focal_tversky_kernel,
        alpha=float(alpha), beta=float(beta),
        gamma=float(gamma), smooth=float(smooth),
        valid_rows=int(rows), tile_rows=int(tile_rows),
        needs_mask=bool(needs_mask))

    out = pl.pallas_call(
        kernel,
        out_shape=jax.ShapeDtypeStruct((1, 1), jnp.float32),
        grid_spec=pltpu.PrefetchScalarGridSpec(
            num_scalar_prefetch=0,
            grid=(int(grid),),
            in_specs=[
                pl.BlockSpec((tile_rows, LANES), lambda i: (i, 0)),
                pl.BlockSpec((tile_rows, LANES), lambda i: (i, 0)),
            ],
            out_specs=pl.BlockSpec(memory_space=pltpu.MemorySpace.SMEM),
            scratch_shapes=[
                pltpu.VMEM((1, LANES), jnp.float32),  # per-lane sum(p * t)
                pltpu.VMEM((1, LANES), jnp.float32),  # per-lane sum(p)
                pltpu.VMEM((1, LANES), jnp.float32),  # per-lane sum(t)
            ],
        ),
        compiler_params=pltpu.CompilerParams(
            dimension_semantics=("arbitrary",)),
    )(o2, t2)
    # TODO(synk): on v7x a leading "parallel" grid axis could split the
    # reduction across both TensorCores (per-core partials + wrapper combine);
    # kept single-core sequential for robustness.
    return out[0, 0]


def _reference(outputs, targets, alpha=0.5, beta=0.5, gamma=2.0, smooth=1e-5):
    p = jax.nn.sigmoid(outputs.astype(jnp.float32)).ravel()
    t = targets.astype(jnp.float32).ravel()
    tp = jnp.sum(p * t)
    fp = jnp.sum((1.0 - t) * p)
    fn = jnp.sum(t * (1.0 - p))
    tversky = (tp + smooth) / (tp + alpha * fp + beta * fn + smooth)
    return (1.0 - tversky) ** gamma


if __name__ == "__main__":
    key = jax.random.PRNGKey(0)
    k1, k2, k3, k4 = jax.random.split(key, 4)

    # NCHW: batch=2, channels=4, spatial=16x16 (lane-aligned total).
    outputs = jax.random.normal(k1, (2, 4, 16, 16), dtype=jnp.float32)
    targets = (jax.random.uniform(k2, (2, 4, 16, 16)) > 0.5).astype(jnp.float32)
    loss = focal_tversky_loss(outputs, targets)
    jax.block_until_ready(loss)
    ref = _reference(outputs, targets)
    assert jnp.allclose(loss, ref, rtol=1e-4, atol=1e-6), (loss, ref)

    # Unaligned total: exercises the neutral-pad + last-tile row-mask path.
    outputs2 = jax.random.normal(k3, (2, 3, 15, 17), dtype=jnp.float32)
    targets2 = (jax.random.uniform(k4, (2, 3, 15, 17)) > 0.5).astype(jnp.float32)
    loss2 = focal_tversky_loss(outputs2, targets2)
    jax.block_until_ready(loss2)
    ref2 = _reference(outputs2, targets2)
    assert jnp.allclose(loss2, ref2, rtol=1e-4, atol=1e-6), (loss2, ref2)

    print("KERNEL_OK")
</pallas_src>

<mosaic_0001>
module attributes {stable_mosaic.version = 11 : i64} {
  func.func @_focal_tversky_kernel(%arg0: i32, %arg1: memref<16x128xf32, #tpu.memory_space<vmem>>, %arg2: memref<16x128xf32, #tpu.memory_space<vmem>>, %arg3: memref<1x1xf32, #tpu.memory_space<smem>>, %arg4: memref<1x128xf32, #tpu.memory_space<vmem>>, %arg5: memref<1x128xf32, #tpu.memory_space<vmem>>, %arg6: memref<1x128xf32, #tpu.memory_space<vmem>>) attributes {dimension_semantics = [#tpu.dimension_semantics<arbitrary>], iteration_bounds = array<i64: 1>, scalar_prefetch = 0 : i64, scratch_operands = 3 : i64, tpu.core_type = #tpu.core_type<tc>, window_params = [{transform_indices = @transform_0, window_bounds = array<i64: 16, 128>}, {transform_indices = @transform_1, window_bounds = array<i64: 16, 128>}, {transform_indices = @transform_2, window_bounds = array<i64: 1, 1>}]} {
    %c0_i32 = arith.constant 0 : i32
    %0 = arith.cmpi eq, %arg0, %c0_i32 : i32
    %1 = arith.extui %0 : i1 to i32
    %c0_i32_0 = arith.constant 0 : i32
    %2 = arith.cmpi ne, %1, %c0_i32_0 : i32
    scf.if %2 {
      %cst_21 = arith.constant 0.000000e+00 : f32
      %29 = vector.broadcast %cst_21 : f32 to vector<1x128xf32>
      %c0_22 = arith.constant 0 : index
      %c0_23 = arith.constant 0 : index
      %30 = vector.load %arg4[%c0_22, %c0_23] : memref<1x128xf32, #tpu.memory_space<vmem>>, vector<1x128xf32>
      tpu.vector_store %arg4[%c0_22, %c0_23], %29 {strides = array<i32>} : memref<1x128xf32, #tpu.memory_space<vmem>>, vector<1x128xf32>,
      %cst_24 = arith.constant 0.000000e+00 : f32
      %31 = vector.broadcast %cst_24 : f32 to vector<1x128xf32>
      %c0_25 = arith.constant 0 : index
      %c0_26 = arith.constant 0 : index
      %32 = vector.load %arg5[%c0_25, %c0_26] : memref<1x128xf32, #tpu.memory_space<vmem>>, vector<1x128xf32>
      tpu.vector_store %arg5[%c0_25, %c0_26], %31 {strides = array<i32>} : memref<1x128xf32, #tpu.memory_space<vmem>>, vector<1x128xf32>,
      %cst_27 = arith.constant 0.000000e+00 : f32
      %33 = vector.broadcast %cst_27 : f32 to vector<1x128xf32>
      %c0_28 = arith.constant 0 : index
      %c0_29 = arith.constant 0 : index
      %34 = vector.load %arg6[%c0_28, %c0_29] : memref<1x128xf32, #tpu.memory_space<vmem>>, vector<1x128xf32>
      tpu.vector_store %arg6[%c0_28, %c0_29], %33 {strides = array<i32>} : memref<1x128xf32, #tpu.memory_space<vmem>>, vector<1x128xf32>,
    } else {
    }
    %c0 = arith.constant 0 : index
    %c0_1 = arith.constant 0 : index
    %3 = vector.load %arg1[%c0, %c0_1] : memref<16x128xf32, #tpu.memory_space<vmem>>, vector<16x128xf32>
    %4 = arith.negf %3 : vector<16x128xf32>
    %5 = math.exp %4 : vector<16x128xf32>
    %cst = arith.constant 1.000000e+00 : f32
    %6 = vector.broadcast %cst : f32 to vector<16x128xf32>
    %7 = arith.addf %6, %5 : vector<16x128xf32>
    %8 = arith.divf %6, %7 : vector<16x128xf32>
    %c0_2 = arith.constant 0 : index
    %c0_3 = arith.constant 0 : index
    %9 = vector.load %arg2[%c0_2, %c0_3] : memref<16x128xf32, #tpu.memory_space<vmem>>, vector<16x128xf32>
    %c0_4 = arith.constant 0 : index
    %c0_5 = arith.constant 0 : index
    %10 = vector.load %arg4[%c0_4, %c0_5] : memref<1x128xf32, #tpu.memory_space<vmem>>, vector<1x128xf32>
    %11 = arith.mulf %8, %9 : vector<16x128xf32>
    %cst_6 = arith.constant dense<0.000000e+00> : vector<128xf32>
    %12 = vector.multi_reduction <add>, %11, %cst_6 [0] : vector<16x128xf32> to vector<128xf32>
    %13 = vector.shape_cast %12 : vector<128xf32> to vector<1x128xf32>
    %14 = arith.addf %10, %13 : vector<1x128xf32>
    %c0_7 = arith.constant 0 : index
    %c0_8 = arith.constant 0 : index
    %15 = vector.load %arg4[%c0_7, %c0_8] : memref<1x128xf32, #tpu.memory_space<vmem>>, vector<1x128xf32>
    tpu.vector_store %arg4[%c0_7, %c0_8], %14 {strides = array<i32>} : memref<1x128xf32, #tpu.memory_space<vmem>>, vector<1x128xf32>,
    %c0_9 = arith.constant 0 : index
    %c0_10 = arith.constant 0 : index
    %16 = vector.load %arg5[%c0_9, %c0_10] : memref<1x128xf32, #tpu.memory_space<vmem>>, vector<1x128xf32>
    %cst_11 = arith.constant dense<0.000000e+00> : vector<128xf32>
    %17 = vector.multi_reduction <add>, %8, %cst_11 [0] : vector<16x128xf32> to vector<128xf32>
    %18 = vector.shape_cast %17 : vector<128xf32> to vector<1x128xf32>
    %19 = arith.addf %16, %18 : vector<1x128xf32>
    %c0_12 = arith.constant 0 : index
    %c0_13 = arith.constant 0 : index
    %20 = vector.load %arg5[%c0_12, %c0_13] : memref<1x128xf32, #tpu.memory_space<vmem>>, vector<1x128xf32>
    tpu.vector_store %arg5[%c0_12, %c0_13], %19 {strides = array<i32>} : memref<1x128xf32, #tpu.memory_space<vmem>>, vector<1x128xf32>,
    %c0_14 = arith.constant 0 : index
    %c0_15 = arith.constant 0 : index
    %21 = vector.load %arg6[%c0_14, %c0_15] : memref<1x128xf32, #tpu.memory_space<vmem>>, vector<1x128xf32>
    %cst_16 = arith.constant dense<0.000000e+00> : vector<128xf32>
    %22 = vector.multi_reduction <add>, %9, %cst_16 [0] : vector<16x128xf32> to vector<128xf32>
    %23 = vector.shape_cast %22 : vector<128xf32> to vector<1x128xf32>
    %24 = arith.addf %21, %23 : vector<1x128xf32>
    %c0_17 = arith.constant 0 : index
    %c0_18 = arith.constant 0 : index
    %25 = vector.load %arg6[%c0_17, %c0_18] : memref<1x128xf32, #tpu.memory_space<vmem>>, vector<1x128xf32>
    tpu.vector_store %arg6[%c0_17, %c0_18], %24 {strides = array<i32>} : memref<1x128xf32, #tpu.memory_space<vmem>>, vector<1x128xf32>,
    %c0_i32_19 = arith.constant 0 : i32
    %26 = arith.cmpi eq, %arg0, %c0_i32_19 : i32
    %27 = arith.extui %26 : i1 to i32
    %c0_i32_20 = arith.constant 0 : i32
    %28 = arith.cmpi ne, %27, %c0_i32_20 : i32
    scf.if %28 {
      %c0_21 = arith.constant 0 : index
      %c0_22 = arith.constant 0 : index
      %29 = vector.load %arg4[%c0_21, %c0_22] : memref<1x128xf32, #tpu.memory_space<vmem>>, vector<1x128xf32>
      %30 = vector.shape_cast %29 : vector<1x128xf32> to vector<1x1x128xf32>
      %cst_23 = arith.constant dense<0.000000e+00> : vector<1xf32>
      %31 = vector.multi_reduction <add>, %30, %cst_23 [1, 2] : vector<1x1x128xf32> to vector<1xf32>
      %32 = vector.shape_cast %31 : vector<1xf32> to vector<1x1x1xf32>
      %33 = vector.extract %32[0, 0, 0] : f32 from vector<1x1x1xf32>
      %c0_24 = arith.constant 0 : index
      %c0_25 = arith.constant 0 : index
      %34 = vector.load %arg5[%c0_24, %c0_25] : memref<1x128xf32, #tpu.memory_space<vmem>>, vector<1x128xf32>
      %35 = vector.shape_cast %34 : vector<1x128xf32> to vector<1x1x128xf32>
      %cst_26 = arith.constant dense<0.000000e+00> : vector<1xf32>
      %36 = vector.multi_reduction <add>, %35, %cst_26 [1, 2] : vector<1x1x128xf32> to vector<1xf32>
      %37 = vector.shape_cast %36 : vector<1xf32> to vector<1x1x1xf32>
      %38 = vector.extract %37[0, 0, 0] : f32 from vector<1x1x1xf32>
      %c0_27 = arith.constant 0 : index
      %c0_28 = arith.constant 0 : index
      %39 = vector.load %arg6[%c0_27, %c0_28] : memref<1x128xf32, #tpu.memory_space<vmem>>, vector<1x128xf32>
      %40 = vector.shape_cast %39 : vector<1x128xf32> to vector<1x1x128xf32>
      %cst_29 = arith.constant dense<0.000000e+00> : vector<1xf32>
      %41 = vector.multi_reduction <add>, %40, %cst_29 [1, 2] : vector<1x1x128xf32> to vector<1xf32>
      %42 = vector.shape_cast %41 : vector<1xf32> to vector<1x1x1xf32>
      %43 = vector.extract %42[0, 0, 0] : f32 from vector<1x1x1xf32>
      %44 = arith.subf %38, %33 : f32
      %45 = arith.subf %43, %33 : f32
      %cst_30 = arith.constant 9.99999974E-6 : f32
      %46 = arith.addf %33, %cst_30 : f32
      %cst_31 = arith.constant 5.000000e-01 : f32
      %47 = arith.mulf %cst_31, %44 : f32
      %48 = arith.addf %33, %47 : f32
      %cst_32 = arith.constant 5.000000e-01 : f32
      %49 = arith.mulf %cst_32, %45 : f32
      %50 = arith.addf %48, %49 : f32
      %cst_33 = arith.constant 9.99999974E-6 : f32
      %51 = arith.addf %50, %cst_33 : f32
      %52 = arith.divf %46, %51 : f32
      %cst_34 = arith.constant 1.000000e+00 : f32
      %53 = arith.subf %cst_34, %52 : f32
      %cst_35 = arith.constant 0.000000e+00 : f32
      %54 = arith.maximumf %53, %cst_35 : f32
      %55 = arith.mulf %54, %54 : f32
      %c0_36 = arith.constant 0 : index
      %c0_37 = arith.constant 0 : index
      %56 = memref.load %arg3[%c0_36, %c0_37] : memref<1x1xf32, #tpu.memory_space<smem>>
      memref.store %55, %arg3[%c0_36, %c0_37] : memref<1x1xf32, #tpu.memory_space<smem>>
    } else {
    }
    return
  }
  func.func @transform_0(%arg0: i32) -> (i32, i32) {
    %c0_i32 = arith.constant 0 : i32
    %c0_i32_0 = arith.constant 0 : i32
    return %arg0, %c0_i32 : i32, i32
  }
  func.func @transform_1(%arg0: i32) -> (i32, i32) {
    %c0_i32 = arith.constant 0 : i32
    %c0_i32_0 = arith.constant 0 : i32
    return %arg0, %c0_i32 : i32, i32
  }
  func.func @transform_2(%arg0: i32) -> (i32, i32) {
    %c0_i32 = arith.constant 0 : i32
    %c0_i32_0 = arith.constant 0 : i32
    %c0_i32_1 = arith.constant 0 : i32
    return %c0_i32, %c0_i32_0 : i32, i32
  }
}

</mosaic_0001>

<llo_original>
// kernel: tpu_custom_call.1
$region0: #{tpu_custom_call.1}
  #allocation0 [shape = 'u32[]', space=smem, size = 0x4, offset = 0x4, fixed_abs, tag = 'smem constant byte address 0x4 - core index']
  #allocation1 [shape = 'u32[144,128]{1,0:T(1,128)}', space=vmem, size = 0x12000, scoped, tag = 'internal scratch']
  #allocation2 [shape = 'f32[1,128]{1,0:T(1,128)}', space=vmem, size = 0x200, scoped, tag = 'scratch operand']
  #allocation3 [shape = 'f32[1,128]{1,0:T(1,128)}', space=vmem, size = 0x200, scoped, tag = 'scratch operand']
  #allocation4 [shape = 'f32[1,128]{1,0:T(1,128)}', space=vmem, size = 0x200, scoped, tag = 'scratch operand']
  %s0 = inlined_call_operand.hbm [shape: f32[16,128], index: 0, kind: input, shape index: {}]
  %s1 = inlined_call_operand.hbm [shape: f32[16,128], index: 1, kind: input, shape index: {}]
  %s2 = inlined_call_operand.hbm [shape: f32[1,1], index: 2, kind: output, shape index: {}]
  %s3 = sld [smem:[#allocation0]]
  $region34: #{tpu_custom_call.1} parent=0
    _
  %s5 = ssub.s32 1, %s3
  %s6 = scalar_select 0, %s5, %s3
  $region1: #{tpu_custom_call.1} parent=0
    #allocation5 [shape = 'u8[8192]{0}', space=vmem, size = 0x2000, scoped, tag = 'input window, operand 0, single buffered']
    #allocation6 [shape = 's32[1]{0}', space=sflag, size = 0x4, scoped, tag = 'scoped memory for tpu_custom_call.1']
    #allocation7 [shape = 's32[1]{0}', space=sflag, size = 0x4, scoped, tag = 'scoped memory for tpu_custom_call.1']
    #allocation8 [shape = 'u8[8192]{0}', space=vmem, size = 0x2000, scoped, tag = 'input window, operand 1, single buffered']
    #allocation9 [shape = 's32[1]{0}', space=sflag, size = 0x4, scoped, tag = 'scoped memory for tpu_custom_call.1']
    #allocation10 [shape = 'u8[512]{0}', space=smem, size = 0x200, scoped, tag = 'output window, operand 0, single buffered']
    %7 = vsyncpa [#allocation6], 0
    %8 = vsyncpa [#allocation9], 0
    %9 = vsyncpa [#allocation7], 0
    // Predicated region
    $region2: #{tpu_custom_call.1} parent=1 // pred_check
      _
    $region3: #{tpu_custom_call.1} parent=1 // pred_check_branch
      %11 = sbr.rel (0) target = $region5
    $region4: #{tpu_custom_call.1} parent=1 // pred_region
      %s13 = ssub.s32 256, 256
      %14 = vsyncadd [#allocation6], %s13
      %s15 = sshll.u32 [#allocation5], 4
      %s16 = int_to_ptr.vmem [resolvable:$true] %s15
      %21 = dma.hbm_to_vmem [thread:$0]  %s0, 256, %s16, [#allocation6], 128, 128, 8
    $region5: #{tpu_custom_call.1} parent=1 // pred_fallthru
      _
    // Predicated region
    $region6: #{tpu_custom_call.1} parent=1 // pred_check
      _
    $region7: #{tpu_custom_call.1} parent=1 // pred_check_branch
      %23 = sbr.rel (0) target = $region9
    $region8: #{tpu_custom_call.1} parent=1 // pred_region
      %s25 = ssub.s32 256, 256
      %26 = vsyncadd [#allocation9], %s25
      %s27 = sshll.u32 [#allocation8], 4
      %s28 = int_to_ptr.vmem [resolvable:$true] %s27
      %33 = dma.hbm_to_vmem [thread:$0]  %s1, 256, %s28, [#allocation9], 128, 128, 8
    $region9: #{tpu_custom_call.1} parent=1 // pred_fallthru
      _
    // Predicated region
    $region10: #{tpu_custom_call.1} parent=1 // pred_check
      _
    $region11: #{tpu_custom_call.1} parent=1 // pred_check_branch
      %35 = sbr.rel (0) target = $region13
    $region12: #{tpu_custom_call.1} parent=1 // pred_region
      %36 = dma.done [#allocation6], 256
    $region13: #{tpu_custom_call.1} parent=1 // pred_fallthru
      _
    // Predicated region
    $region14: #{tpu_custom_call.1} parent=1 // pred_check
      _
    $region15: #{tpu_custom_call.1} parent=1 // pred_check_branch
      %38 = sbr.rel (0) target = $region17
    $region16: #{tpu_custom_call.1} parent=1 // pred_region
      %39 = dma.done [#allocation9], 256
    $region17: #{tpu_custom_call.1} parent=1 // pred_fallthru
      _
    %p40 = scmp.eq.s32.totalorder 0, 0
    // Predicated region
    $region18: #{tpu_custom_call.1} parent=1 // pred_check
      %p41 = pneg %p40
    $region19: #{tpu_custom_call.1} parent=1 // pred_check_branch
      %43 = sbr.rel (%p41) target = $region21
    $region20: #{tpu_custom_call.1} parent=1 // pred_region
      %44 = vst [vmem:[#allocation2] sm:$0x1] 0.0
      %45 = vst [vmem:[#allocation3] sm:$0x1] 0.0
      %46 = vst [vmem:[#allocation4] sm:$0x1] 0.0
    $region21: #{tpu_custom_call.1} parent=1 // pred_fallthru
      _
    %v47 = vld [vmem:[#allocation5] sm:$0xff]
    %v48 = vld [vmem:[#allocation5 + $0x8] sm:$0xff]
    %v49 = vxor.u32 %v47, 2147483648
    %v50 = vxor.u32 %v48, 2147483648
    %v51 = vmul.f32 %v49, 1.442695
    %v52 = vpow.pop %v51
    %v53 = vmul.f32 %v50, 1.442695
    %v54 = vpow.pop %v53
    %v55 = vadd.f32 %v52, 1.0
    %v56 = vadd.f32 %v54, 1.0
    %v57 = vrcp.pop %v55
    %v58 = vmul.f32 1.0, %v57
    %v59 = vrcp.pop %v56
    %v60 = vmul.f32 1.0, %v59
    %v61 = vld [vmem:[#allocation8] sm:$0xff]
    %v62 = vld [vmem:[#allocation8 + $0x8] sm:$0xff]
    %v63 = vld [vmem:[#allocation2] sm:$0x1]
    %v64 = vmul.f32 %v58, %v61
    %v65 = vmul.f32 %v60, %v62
    %v66 = vadd.f32 %v64, %v65
    %v67 = vrot.slane %v66, 4
    %v68 = vadd.f32 %v66, %v67
    %v69 = vrot.slane %v68, 2
    %v70 = vadd.f32 %v68, %v69
    %v71 = vrot.slane %v70, 1
    %v72 = vadd.f32 %v70, %v71
    %v73 = vadd.f32 %v63, %v72
    %74 = vst [vmem:[#allocation2] sm:$0x1] %v73
    %v75 = vld [vmem:[#allocation3] sm:$0x1]
    %v76 = vadd.f32 %v58, %v60
    %v77 = vrot.slane %v76, 4
    %v78 = vadd.f32 %v76, %v77
    %v79 = vrot.slane %v78, 2
    %v80 = vadd.f32 %v78, %v79
    %v81 = vrot.slane %v80, 1
    %v82 = vadd.f32 %v80, %v81
    %v83 = vadd.f32 %v75, %v82
    %84 = vst [vmem:[#allocation3] sm:$0x1] %v83
    %v85 = vld [vmem:[#allocation4] sm:$0x1]
    %v86 = vadd.f32 %v61, %v62
    %v87 = vrot.slane %v86, 4
    %v88 = vadd.f32 %v86, %v87
    %v89 = vrot.slane %v88, 2
    %v90 = vadd.f32 %v88, %v89
    %v91 = vrot.slane %v90, 1
    %v92 = vadd.f32 %v90, %v91
    %v93 = vadd.f32 %v85, %v92
    %94 = vst [vmem:[#allocation4] sm:$0x1] %v93
    // Predicated region
    $region22: #{tpu_custom_call.1} parent=1 // pred_check
      %p95 = pneg %p40
    $region23: #{tpu_custom_call.1} parent=1 // pred_check_branch
      %97 = sbr.rel (%p95) target = $region25
    $region24: #{tpu_custom_call.1} parent=1 // pred_region
      %v98 = vld [vmem:[#allocation2] sm:$0x1]
      %vm99 = vcmask 1040384
      %v100 = vsel %vm99, %v98, 0.0
      %101 = vadd.xlane.f32.xlu0 %v100
      %v102 = vpop.xlane.xlu0 %101
      %v103 = vrot.slane %v102, 4
      %v104 = vadd.f32 %v102, %v103
      %v105 = vrot.slane %v104, 2
      %v106 = vadd.f32 %v104, %v105
      %v107 = vrot.slane %v106, 1
      %v108 = vadd.f32 %v106, %v107
      %s109 = vtos %v108
      %v110 = vld [vmem:[#allocation3] sm:$0x1]
      %v111 = vsel %vm99, %v110, 0.0
      %112 = vadd.xlane.f32.xlu0 %v111
      %v113 = vpop.xlane.xlu0 %112
      %v114 = vrot.slane %v113, 4
      %v115 = vadd.f32 %v113, %v114
      %v116 = vrot.slane %v115, 2
      %v117 = vadd.f32 %v115, %v116
      %v118 = vrot.slane %v117, 1
      %v119 = vadd.f32 %v117, %v118
      %s120 = vtos %v119
      %v121 = vld [vmem:[#allocation4] sm:$0x1]
      %v122 = vsel %vm99, %v121, 0.0
      %123 = vadd.xlane.f32.xlu0 %v122
      %v124 = vpop.xlane.xlu0 %123
      %v125 = vrot.slane %v124, 4
      %v126 = vadd.f32 %v124, %v125
      %v127 = vrot.slane %v126, 2
      %v128 = vadd.f32 %v126, %v127
      %v129 = vrot.slane %v128, 1
      %v130 = vadd.f32 %v128, %v129
      %s131 = vtos %v130
      %s132 = ssub.f32 %s120, %s109
      %s133 = ssub.f32 %s131, %s109
      %s134 = sadd.f32 %s109, 1e-05
      %s135 = smul.f32 %s132, 0.5
      %s136 = sadd.f32 %s109, %s135
      %s137 = smul.f32 %s133, 0.5
      %s138 = sadd.f32 %s136, %s137
      %s139 = sadd.f32 %s138, 1e-05
      %v140 = vstv %s139
      %v141 = vrcp.pop %v140
      %s142 = vtos %v141
      %s143 = smul.f32 %s134, %s142
      %s144 = ssub.f32 1.0, %s143
      %s145 = smax.f32 %s144, 0.0
      %s146 = smul.f32 %s145, %s145
      %s147 = scalar_lea.smem [#allocation10], 0
      %148 = sst [smem:[%s147]] %s146
    $region25: #{tpu_custom_call.1} parent=1 // pred_fallthru
      _
    // Predicated region
    $region26: #{tpu_custom_call.1} parent=1 // pred_check
      _
    $region27: #{tpu_custom_call.1} parent=1 // pred_check_branch
      %150 = sbr.rel (0) target = $region29
    $region28: #{tpu_custom_call.1} parent=1 // pred_region
      %s152 = ssub.s32 16, 16
      %153 = vsyncadd [#allocation7], %s152
      %156 = dma.smem_to_hbm [#allocation10], 16, %s2, [#allocation7]
    $region29: #{tpu_custom_call.1} parent=1 // pred_fallthru
      _
    // Predicated region
    $region30: #{tpu_custom_call.1} parent=1 // pred_check
      _
    $region31: #{tpu_custom_call.1} parent=1 // pred_check_branch
      %158 = sbr.rel (0) target = $region33
    $region32: #{tpu_custom_call.1} parent=1 // pred_region
      %159 = dma.done [#allocation7], 16
    $region33: #{tpu_custom_call.1} parent=1 // pred_fallthru
      _
    %160 = sfence
    %161 = vsyncpa [#allocation6], 1
    %162 = vsyncpa [#allocation9], 1
    %163 = vsyncpa [#allocation7], 1

</llo_original>
